<compile_context>
chip_gen: v7x
topology: tpu7x:2x2x1
jax: 0.10.0
libtpu: 0.0.40
codegen_flags: <defaults>
</compile_context>

<pallas_src>
import functools

import jax
import jax.numpy as jnp
from jax import lax
from jax.experimental import pallas as pl
from jax.experimental.pallas import tpu as pltpu


def _contrastive_row_block_kernel(xr_ref, xct_ref, out_ref, *,
                                  num_smp, n_valid, n_pad, tm, inv_pos_cnt):
    """One row block: sim = xr @ xct (MXU), then masked row reductions.

    xr_ref : [tm, D]      pre-normalized row tile (bf16 or f32)
    xct_ref: [D, N_pad]   pre-normalized, pre-transposed resident column operand
    out_ref: [tm, 1]      per-row loss
    """
    i = pl.program_id(0)

    # Cosine-similarity block: single standard-contraction MXU matmul, f32 accumulation.
    sim = jnp.dot(xr_ref[...], xct_ref[...],
                  preferred_element_type=jnp.float32)            # [tm, N_pad] f32

    # Masks from 1-D iotas (tm + N_pad modulos), kept boolean; padded columns excluded.
    ri = i * tm + lax.broadcasted_iota(jnp.int32, (tm, 1), 0)    # global row ids
    ci = lax.broadcasted_iota(jnp.int32, (1, n_pad), 1)          # global col ids
    valid_col = ci < n_valid
    same_sample = (ri % num_smp) == (ci % num_smp)
    diag = ri == ci
    neg = valid_col & jnp.logical_not(same_sample)               # different sample
    pos = valid_col & same_sample & jnp.logical_not(diag)        # same sample, other view

    # Denominator: sum over negatives of exp(sim).  Numerator: sum of sim over positives
    # (log(exp(sim)) == sim), with the positive count folded in as a compile-time const.
    # TODO(synk): if the bundle shows the single EUP slot saturating on v6e/v7x (small D),
    # compute exp at bf16 there; kept f32 here for v5e compatibility / accuracy.
    neg_sum = jnp.sum(jnp.where(neg, jnp.exp(sim), 0.0), axis=1, keepdims=True)  # [tm,1]
    pos_sum = jnp.sum(jnp.where(pos, sim, 0.0), axis=1, keepdims=True)           # [tm,1]

    out_ref[...] = -(pos_sum * inv_pos_cnt - jnp.log(neg_sum))


def _round_up(x: int, m: int) -> int:
    return ((x + m - 1) // m) * m


def _plan_row_tile(n: int, max_tile: int = 512):
    """Row tile (multiple of 8, <= max_tile) and padded row count.

    Prefers >= 2 row blocks so the 'parallel' grid axis can shard across v7x's two
    TensorCores; pads n up instead of falling back to tiny divisors or a full-N block.
    """
    if n <= 16:
        tm = 8
    else:
        tm = min(max_tile, _round_up((n + 1) // 2, 8))
    n_pad = _round_up(n, tm)
    return tm, n_pad


def contrastive_loss_v2(views, temperature: float = 1.0,
                        use_bf16_matmul: bool = True, max_row_tile: int = 512):
    """JAX/Pallas equivalent of ContrastiveLoss_v2.forward.

    views: list/tuple of [num_smp, dim] arrays (already-projected multi-view features).
    Returns (loss, 0, 0).  `temperature` is stored but unused, matching the torch module.
    """
    del temperature  # unused in the reference forward pass
    num_view = len(views)
    if num_view < 2:
        raise ValueError("ContrastiveLoss_v2 needs at least 2 views (num_view-1 positives).")
    num_smp = views[0].shape[0]

    x = jnp.concatenate(views, axis=0).astype(jnp.float32)        # [N, D]
    n, d = x.shape

    # --- one-time wrapper-side preprocessing (was per-grid-step in the old kernel) ---
    # L2-normalize rows once; epsilon keeps zero rows finite (matches torch there).
    xn = x * lax.rsqrt(jnp.sum(x * x, axis=1, keepdims=True) + 1e-24)
    mm_dtype = jnp.bfloat16 if use_bf16_matmul else jnp.float32
    xn = xn.astype(mm_dtype)                                      # operand HBM/VMEM bytes halved

    tm, n_pad = _plan_row_tile(n, max_row_tile)
    if n_pad != n:
        xn = jnp.pad(xn, ((0, n_pad - n), (0, 0)))                # zero rows, masked in-kernel
    xct = xn.T                                                    # [D, N_pad] K-major resident copy

    # Explicit VMEM budget (resident operand + double-buffered row tiles + f32 temps),
    # capped at 64 MiB so the same plan fits v7x.
    op_itemsize = 2 if use_bf16_matmul else 4
    est = (d * n_pad * op_itemsize            # resident column operand (Buffered(1))
           + 2 * tm * d * op_itemsize         # double-buffered row tiles
           + 3 * tm * n_pad * 4               # sim / exp / masked-select f32 temporaries
           + 4 * tm * 4)                      # output blocks + per-row partials
    vmem_limit_bytes = int(min(64 * 1024 * 1024, max(32 * 1024 * 1024, 2 * est)))

    kernel = functools.partial(
        _contrastive_row_block_kernel,
        num_smp=num_smp, n_valid=n, n_pad=n_pad, tm=tm,
        inv_pos_cnt=1.0 / float(num_view - 1),
    )

    per_row = pl.pallas_call(
        kernel,
        out_shape=jax.ShapeDtypeStruct((n_pad, 1), jnp.float32),
        grid_spec=pltpu.PrefetchScalarGridSpec(
            num_scalar_prefetch=0,
            grid=(n_pad // tm,),
            in_specs=[
                # Row tile, auto-pipelined (double-buffered) across row blocks.
                pl.BlockSpec((tm, d), lambda i: (i, 0)),
                # Full column operand: constant block index -> DMA'd once, and
                # single-buffered so it is not duplicated in VMEM (v7x budget).
                pl.BlockSpec((d, n_pad), lambda i: (0, 0),
                             pipeline_mode=pl.Buffered(1)),
            ],
            out_specs=pl.BlockSpec((tm, 1), lambda i: (i, 0)),
        ),
        compiler_params=pltpu.CompilerParams(
            dimension_semantics=("parallel",),
            vmem_limit_bytes=vmem_limit_bytes,
        ),
    )(xn, xct)

    loss = jnp.mean(per_row[:n, 0])   # padded rows excluded; tiny wrapper-side reduction
    return loss, 0, 0


def _reference_loss(views):
    """Pure-jnp reference mirroring the torch code, for correctness checking."""
    num_view = len(views)
    num_smp = views[0].shape[0]
    x = jnp.concatenate(views, axis=0).astype(jnp.float32)
    n = num_view * num_smp
    norm_x = jnp.linalg.norm(x, ord=2, axis=1, keepdims=True)
    sim_x = (x @ x.T) / (norm_x @ norm_x.T + 1e-12)
    pos_mask = jnp.tile(jnp.eye(num_smp), (num_view, num_view))
    neg_mask = jnp.ones_like(pos_mask) - pos_mask
    idx = jnp.arange(n)
    pos_mask = pos_mask.at[idx, idx].set(0.0)
    logits = jnp.exp(sim_x)
    log_prob = jnp.log(logits) - jnp.log(jnp.sum(logits * neg_mask, axis=1, keepdims=True))
    mean_log_prob_pos = -jnp.sum(pos_mask * log_prob, axis=1) / jnp.sum(pos_mask, axis=1)
    return jnp.mean(mean_log_prob_pos)


if __name__ == "__main__":
    key = jax.random.PRNGKey(0)

    # Small deterministic example: 2 views, 8 samples per view, 32-dim features (N=16).
    num_view, num_smp, dim = 2, 8, 32
    keys = jax.random.split(key, num_view)
    views = [jax.random.normal(k, (num_smp, dim), dtype=jnp.float32) for k in keys]
    ref = jax.block_until_ready(_reference_loss(views))

    # f32-operand path: reference-accuracy check.
    loss_f32, _, _ = contrastive_loss_v2(views, temperature=1.0, use_bf16_matmul=False)
    loss_f32 = jax.block_until_ready(loss_f32)
    assert jnp.allclose(loss_f32, ref, rtol=1e-5, atol=1e-5), (loss_f32, ref)

    # Default bf16-matmul path (f32 accumulation): looser tolerance (~1e-3 sim drift).
    loss_bf16, _, _ = contrastive_loss_v2(views, temperature=1.0)
    loss_bf16 = jax.block_until_ready(loss_bf16)
    assert jnp.allclose(loss_bf16, ref, rtol=2e-2, atol=2e-2), (loss_bf16, ref)

    # Non-divisible N exercises the row/column padding + masking path (N=14 -> N_pad=16).
    num_smp2 = 7
    keys2 = jax.random.split(jax.random.PRNGKey(1), num_view)
    views2 = [jax.random.normal(k, (num_smp2, dim), dtype=jnp.float32) for k in keys2]
    ref2 = jax.block_until_ready(_reference_loss(views2))
    loss2, _, _ = contrastive_loss_v2(views2, use_bf16_matmul=False)
    loss2 = jax.block_until_ready(loss2)
    assert jnp.allclose(loss2, ref2, rtol=1e-5, atol=1e-5), (loss2, ref2)

    print("KERNEL_OK")
</pallas_src>

<mosaic_0001>
module attributes {stable_mosaic.version = 11 : i64} {
  func.func @_contrastive_row_block_kernel(%arg0: i32, %arg1: memref<8x32xf32, #tpu.memory_space<vmem>>, %arg2: memref<32x16xf32, #tpu.memory_space<vmem>>, %arg3: memref<8x1xf32, #tpu.memory_space<vmem>>) attributes {dimension_semantics = [#tpu.dimension_semantics<parallel>], iteration_bounds = array<i64: 2>, scalar_prefetch = 0 : i64, scratch_operands = 0 : i64, tpu.core_type = #tpu.core_type<tc>, window_params = [{transform_indices = @transform_0, window_bounds = array<i64: 8, 32>}, {pipeline_mode = #tpu.pipeline_mode<synchronous>, transform_indices = @transform_1, window_bounds = array<i64: 32, 16>}, {transform_indices = @transform_2, window_bounds = array<i64: 8, 1>}]} {
    %c0 = arith.constant 0 : index
    %c0_0 = arith.constant 0 : index
    %0 = vector.load %arg1[%c0, %c0_0] : memref<8x32xf32, #tpu.memory_space<vmem>>, vector<8x32xf32>
    %c0_1 = arith.constant 0 : index
    %c0_2 = arith.constant 0 : index
    %1 = vector.load %arg2[%c0_1, %c0_2] : memref<32x16xf32, #tpu.memory_space<vmem>>, vector<32x16xf32>
    %cst = arith.constant dense<0.000000e+00> : vector<8x16xf32>
    %2 = tpu.matmul %0, %1, %cst {dimension_numbers = #tpu.dot_dimension_numbers<[1], [0], [0], [1], [0, 0, 1, 1], [], []>} : vector<8x32xf32>, vector<32x16xf32>, vector<8x16xf32> -> vector<8x16xf32>
    %c8_i32 = arith.constant 8 : i32
    %3 = arith.muli %arg0, %c8_i32 : i32
    %4 = tpu.iota {dimensions = array<i32: 0>} : vector<8x1xi32>
    %5 = vector.broadcast %3 : i32 to vector<8x1xi32>
    %6 = arith.addi %5, %4 : vector<8x1xi32>
    %7 = tpu.iota {dimensions = array<i32: 1>} : vector<1x16xi32>
    %c16_i32 = arith.constant 16 : i32
    %8 = vector.broadcast %c16_i32 : i32 to vector<1x16xi32>
    %9 = arith.cmpi slt, %7, %8 : vector<1x16xi32>
    %c8_i32_3 = arith.constant 8 : i32
    %c0_i32 = arith.constant 0 : i32
    %10 = arith.cmpi eq, %c8_i32_3, %c0_i32 : i32
    %c1_i32 = arith.constant 1 : i32
    %11 = arith.select %10, %c1_i32, %c8_i32_3 : i32
    %12 = vector.broadcast %11 : i32 to vector<8x1xi32>
    %13 = arith.remsi %6, %12 : vector<8x1xi32>
    %c0_i32_4 = arith.constant 0 : i32
    %14 = vector.broadcast %c0_i32_4 : i32 to vector<8x1xi32>
    %15 = arith.cmpi ne, %13, %14 : vector<8x1xi32>
    %c0_i32_5 = arith.constant 0 : i32
    %16 = vector.broadcast %c0_i32_5 : i32 to vector<8x1xi32>
    %17 = arith.cmpi slt, %13, %16 : vector<8x1xi32>
    %c0_i32_6 = arith.constant 0 : i32
    %18 = arith.cmpi slt, %11, %c0_i32_6 : i32
    %19 = vector.broadcast %18 : i1 to vector<8x1xi1>
    %20 = vector.broadcast %19 : vector<8x1xi1> to vector<8x1xi1>
    %21 = arith.xori %17, %20 : vector<8x1xi1>
    %22 = arith.andi %21, %15 : vector<8x1xi1>
    %23 = vector.broadcast %11 : i32 to vector<8x1xi32>
    %24 = arith.addi %13, %23 : vector<8x1xi32>
    %25 = arith.select %22, %24, %13 : vector<8x1xi1>, vector<8x1xi32>
    %c8_i32_7 = arith.constant 8 : i32
    %c0_i32_8 = arith.constant 0 : i32
    %26 = arith.cmpi eq, %c8_i32_7, %c0_i32_8 : i32
    %c1_i32_9 = arith.constant 1 : i32
    %27 = arith.select %26, %c1_i32_9, %c8_i32_7 : i32
    %28 = vector.broadcast %27 : i32 to vector<1x16xi32>
    %29 = arith.remsi %7, %28 : vector<1x16xi32>
    %c0_i32_10 = arith.constant 0 : i32
    %30 = vector.broadcast %c0_i32_10 : i32 to vector<1x16xi32>
    %31 = arith.cmpi ne, %29, %30 : vector<1x16xi32>
    %c0_i32_11 = arith.constant 0 : i32
    %32 = vector.broadcast %c0_i32_11 : i32 to vector<1x16xi32>
    %33 = arith.cmpi slt, %29, %32 : vector<1x16xi32>
    %c0_i32_12 = arith.constant 0 : i32
    %34 = arith.cmpi slt, %27, %c0_i32_12 : i32
    %35 = vector.broadcast %34 : i1 to vector<1x16xi1>
    %36 = vector.broadcast %35 : vector<1x16xi1> to vector<1x16xi1>
    %37 = arith.xori %33, %36 : vector<1x16xi1>
    %38 = arith.andi %37, %31 : vector<1x16xi1>
    %39 = vector.broadcast %27 : i32 to vector<1x16xi32>
    %40 = arith.addi %29, %39 : vector<1x16xi32>
    %41 = arith.select %38, %40, %29 : vector<1x16xi1>, vector<1x16xi32>
    %42 = vector.broadcast %25 : vector<8x1xi32> to vector<8x16xi32>
    %43 = vector.broadcast %41 : vector<1x16xi32> to vector<8x16xi32>
    %44 = arith.cmpi eq, %42, %43 : vector<8x16xi32>
    %45 = vector.broadcast %6 : vector<8x1xi32> to vector<8x16xi32>
    %46 = vector.broadcast %7 : vector<1x16xi32> to vector<8x16xi32>
    %47 = arith.cmpi eq, %45, %46 : vector<8x16xi32>
    %cst_13 = arith.constant dense<true> : vector<8x16xi1>
    %48 = arith.xori %44, %cst_13 : vector<8x16xi1>
    %49 = vector.broadcast %9 : vector<1x16xi1> to vector<8x16xi1>
    %50 = arith.andi %49, %48 : vector<8x16xi1>
    %51 = vector.broadcast %9 : vector<1x16xi1> to vector<8x16xi1>
    %52 = arith.andi %51, %44 : vector<8x16xi1>
    %cst_14 = arith.constant dense<true> : vector<8x16xi1>
    %53 = arith.xori %47, %cst_14 : vector<8x16xi1>
    %54 = arith.andi %52, %53 : vector<8x16xi1>
    %55 = math.exp %2 : vector<8x16xf32>
    %cst_15 = arith.constant 0.000000e+00 : f32
    %56 = vector.broadcast %cst_15 : f32 to vector<8x16xf32>
    %57 = arith.select %50, %55, %56 : vector<8x16xi1>, vector<8x16xf32>
    %cst_16 = arith.constant dense<0.000000e+00> : vector<8xf32>
    %58 = vector.multi_reduction <add>, %57, %cst_16 [1] : vector<8x16xf32> to vector<8xf32>
    %59 = vector.shape_cast %58 : vector<8xf32> to vector<8x1xf32>
    %cst_17 = arith.constant 0.000000e+00 : f32
    %60 = vector.broadcast %cst_17 : f32 to vector<8x16xf32>
    %61 = arith.select %54, %2, %60 : vector<8x16xi1>, vector<8x16xf32>
    %cst_18 = arith.constant dense<0.000000e+00> : vector<8xf32>
    %62 = vector.multi_reduction <add>, %61, %cst_18 [1] : vector<8x16xf32> to vector<8xf32>
    %63 = vector.shape_cast %62 : vector<8xf32> to vector<8x1xf32>
    %cst_19 = arith.constant 1.000000e+00 : f32
    %64 = vector.broadcast %cst_19 : f32 to vector<8x1xf32>
    %65 = arith.mulf %63, %64 : vector<8x1xf32>
    %66 = math.log %59 : vector<8x1xf32>
    %67 = arith.subf %65, %66 : vector<8x1xf32>
    %cst_20 = arith.constant 0.000000e+00 : f32
    %68 = vector.broadcast %cst_20 : f32 to vector<8x1xf32>
    %69 = arith.subf %68, %67 : vector<8x1xf32>
    %c0_21 = arith.constant 0 : index
    %c0_22 = arith.constant 0 : index
    %70 = vector.load %arg3[%c0_21, %c0_22] : memref<8x1xf32, #tpu.memory_space<vmem>>, vector<8x1xf32>
    tpu.vector_store %arg3[%c0_21, %c0_22], %69 {strides = array<i32>} : memref<8x1xf32, #tpu.memory_space<vmem>>, vector<8x1xf32>,
    return
  }
  func.func @transform_0(%arg0: i32) -> (i32, i32) {
    %c0_i32 = arith.constant 0 : i32
    %c0_i32_0 = arith.constant 0 : i32
    return %arg0, %c0_i32 : i32, i32
  }
  func.func @transform_1(%arg0: i32) -> (i32, i32) {
    %c0_i32 = arith.constant 0 : i32
    %c0_i32_0 = arith.constant 0 : i32
    %c0_i32_1 = arith.constant 0 : i32
    return %c0_i32, %c0_i32_0 : i32, i32
  }
  func.func @transform_2(%arg0: i32) -> (i32, i32) {
    %c0_i32 = arith.constant 0 : i32
    %c0_i32_0 = arith.constant 0 : i32
    return %arg0, %c0_i32 : i32, i32
  }
}

</mosaic_0001>

<llo_original>
// kernel: tpu_custom_call.1
$region0: #{tpu_custom_call.1}
  #allocation0 [shape = 'u32[]', space=smem, size = 0x4, offset = 0x4, fixed_abs, tag = 'smem constant byte address 0x4 - core index']
  #allocation1 [shape = 'u32[144,128]{1,0:T(1,128)}', space=vmem, size = 0x12000, scoped, tag = 'internal scratch']
  %s0 = inlined_call_operand.vmem [shape: f32[16,32], index: 0, kind: input, shape index: {}]
  %s1 = inlined_call_operand.vmem [shape: f32[32,16], index: 1, kind: input, shape index: {}]
  %s2 = inlined_call_operand.vmem [shape: f32[16,1], index: 2, kind: output, shape index: {}]
  %s3 = sld [smem:[#allocation0]]
  $region41: #{tpu_custom_call.1} parent=0
    _
  %s5 = ssub.s32 1, %s3
  %s6 = scalar_select 0, %s5, %s3
  loop: start=0, step=1, limit=4
  $region2: #{tpu_custom_call.1} parent=0 // loop_pre_header
    _
  $region3: #{tpu_custom_call.1} parent=0 // loop_header
    %s8 = sphi 0, %s12
    %p9 = scmp.ge.s32.totalorder %s8, 4
    %s18 = sphi 0, %s20
    %s21 = sphi 0, %s18
    %s22 = sphi 0, %s21
    %s38 = sphi 0, %s22
    %s42 = sphi 0, %s42
    %s44 = sphi 0, %s42
    %s45 = sphi 0, %s44
    %s59 = sphi 0, %s45
    %s65 = sphi 0, %s67
    %s68 = sphi 0, %s65
    %s69 = sphi 0, %s68
    %s85 = sphi 0, %s69
  $region4: #{tpu_custom_call.1} parent=0 // loop_header_branch
    %11 = sbr.rel (%p9) target = $region8
  $region5: #{tpu_custom_call.1} parent=0 // loop_body
    %s13 = ssub.s32 %s8, 1
    %s14 = ssub.s32 %s8, 2
    %s15 = sadd.s32 %s8, 1
    %s16 = ssub.s32 %s8, %s15
    %p17 = scmp.eq.s32.totalorder %s16, 0
    %s19 = sadd.s32 %s18, 1
    %s20 = scalar_select %p17, %s18, %s19
    %p23 = pneg %p17
    %p24 = scmp.eq.s32.totalorder %s8, 1
    %p25 = por %p23, %p24
    %p26 = scmp.ne.s32.totalorder %s18, %s21
    %p27 = scmp.eq.s32.totalorder %s8, 0
    %p28 = por %p26, %p27
    %p29 = scmp.ne.s32.totalorder %s18, %s21
    %p30 = scmp.eq.s32.totalorder %s13, 1
    %p31 = por %p29, %p30
    %p32 = scmp.ne.s32.totalorder %s21, %s22
    %p33 = scmp.eq.s32.totalorder %s13, 0
    %p34 = por %p32, %p33
    %p35 = scmp.ne.s32.totalorder %s21, %s22
    %p36 = scmp.eq.s32.totalorder %s14, 1
    %p37 = por %p35, %p36
    %p39 = scmp.ne.s32.totalorder %s22, %s38
    %p40 = scmp.eq.s32.totalorder %s14, 0
    %p41 = por %p39, %p40
    %s43 = sadd.s32 %s42, 1
    %p46 = scmp.eq.s32.totalorder %s8, 1
    %p47 = scmp.ne.s32.totalorder %s42, %s44
    %p48 = scmp.eq.s32.totalorder %s8, 0
    %p49 = por %p47, %p48
    %p50 = scmp.ne.s32.totalorder %s42, %s44
    %p51 = scmp.eq.s32.totalorder %s13, 1
    %p52 = por %p50, %p51
    %p53 = scmp.ne.s32.totalorder %s44, %s45
    %p54 = scmp.eq.s32.totalorder %s13, 0
    %p55 = por %p53, %p54
    %p56 = scmp.ne.s32.totalorder %s44, %s45
    %p57 = scmp.eq.s32.totalorder %s14, 1
    %p58 = por %p56, %p57
    %p60 = scmp.ne.s32.totalorder %s45, %s59
    %p61 = scmp.eq.s32.totalorder %s14, 0
    %p62 = por %p60, %p61
    %s63 = ssub.s32 %s8, %s15
    %p64 = scmp.eq.s32.totalorder %s63, 0
    %s66 = sadd.s32 %s65, 1
    %s67 = scalar_select %p64, %s65, %s66
    %p70 = pneg %p64
    %p71 = scmp.eq.s32.totalorder %s8, 1
    %p72 = por %p70, %p71
    %p73 = scmp.ne.s32.totalorder %s65, %s68
    %p74 = scmp.eq.s32.totalorder %s8, 0
    %p75 = por %p73, %p74
    %p76 = scmp.ne.s32.totalorder %s65, %s68
    %p77 = scmp.eq.s32.totalorder %s13, 1
    %p78 = por %p76, %p77
    %p79 = scmp.ne.s32.totalorder %s68, %s69
    %p80 = scmp.eq.s32.totalorder %s13, 0
    %p81 = por %p79, %p80
    %p82 = scmp.ne.s32.totalorder %s68, %s69
    %p83 = scmp.eq.s32.totalorder %s14, 1
    %p84 = por %p82, %p83
    %p86 = scmp.ne.s32.totalorder %s69, %s85
    %p87 = scmp.eq.s32.totalorder %s14, 0
    %p88 = por %p86, %p87
    %p89 = scmp.le.s32.totalorder 1, %s8
    %p90 = scmp.lt.s32.totalorder %s8, 3
    %p91 = pnand %p89, %p90
    %p92 = pneg %p91
    // Predicated region
    $region9: #{tpu_custom_call.1} parent=5 // pred_check
      _
    $region10: #{tpu_custom_call.1} parent=5 // pred_check_branch
      %94 = sbr.rel (%p91) target = $region12
    $region11: #{tpu_custom_call.1} parent=5 // pred_region
      %s95 = ssub.s32 %s8, 1
      // Predicated region
      $region13: #{tpu_custom_call.1} parent=11 // pred_check
        %p96 = pneg %p55
      $region14: #{tpu_custom_call.1} parent=11 // pred_check_branch
        %98 = sbr.rel (%p96) target = $region16
      $region15: #{tpu_custom_call.1} parent=11 // pred_region
        _
      $region16: #{tpu_custom_call.1} parent=11 // pred_fallthru
        _
    $region12: #{tpu_custom_call.1} parent=5 // pred_fallthru
      _
    %p99 = scmp.lt.s32.totalorder %s8, 2
    // Predicated region
    $region17: #{tpu_custom_call.1} parent=5 // pred_check
      %p100 = pneg %p99
    $region18: #{tpu_custom_call.1} parent=5 // pred_check_branch
      %102 = sbr.rel (%p100) target = $region20
    $region19: #{tpu_custom_call.1} parent=5 // pred_region
      // Predicated region
      $region21: #{tpu_custom_call.1} parent=19 // pred_check
        %p103 = pneg %p28
      $region22: #{tpu_custom_call.1} parent=19 // pred_check_branch
        %105 = sbr.rel (%p103) target = $region24
      $region23: #{tpu_custom_call.1} parent=19 // pred_region
        %p106 = scmp.lt.s32.totalorder %s8, 1
        %s107 = scalar_select %p106, %s8, 1
        %s108 = smul.addr %s107, 8
        %s109 = scalar_lea.vmem %s0, %s108
      $region24: #{tpu_custom_call.1} parent=19 // pred_fallthru
        _
    $region20: #{tpu_custom_call.1} parent=5 // pred_fallthru
      _
    %p110 = scmp.le.s32.totalorder 1, %s8
    %p111 = scmp.lt.s32.totalorder %s8, 3
    %p112 = pnand %p110, %p111
    %p113 = pneg %p112
    // Predicated region
    $region25: #{tpu_custom_call.1} parent=5 // pred_check
      _
    $region26: #{tpu_custom_call.1} parent=5 // pred_check_branch
      %115 = sbr.rel (%p112) target = $region28
    $region27: #{tpu_custom_call.1} parent=5 // pred_region
      %s116 = ssub.s32 %s8, 1
      %p117 = scmp.lt.s32.totalorder %s13, 1
      %s118 = scalar_select %p117, %s13, 1
      %s119 = smul.addr %s118, 8
      %s120 = scalar_lea.vmem %s0, %s119
      %p121 = pneg %p34
      %p122 = pneg %p31
      %p123 = pneg %p55
      %p124 = pneg %p52
      %p125 = pneg %p81
      %p126 = pneg %p78
      %p127 = scmp.lt.s32.totalorder %s13, 1
      %s128 = scalar_select %p127, %s13, 1
      %s129 = smul.addr %s128, 8
      %s130 = scalar_lea.vmem %s2, %s129
      %p131 = scmp.lt.s32.totalorder %s13, 1
      %s132 = scalar_select %p131, %s13, 1
      %s133 = smul.addr %s132, 8
      %s134 = scalar_lea.vmem %s0, %s133
      %p135 = scmp.lt.s32.totalorder %s13, 1
      %s136 = scalar_select %p135, %s13, 1
      %s137 = smul.addr %s136, 8
      %s138 = scalar_lea.vmem %s2, %s137
      %v139 = vld [vmem:[%s134] sm:$0xff]
      %v140 = vld [vmem:[%s1] sm:$0xff]
      %v141 = vld [vmem:[%s1 + $0x8] sm:$0xff]
      %v142 = vld [vmem:[%s1 + $0x10] sm:$0xff]
      %v143 = vld [vmem:[%s1 + $0x18] sm:$0xff]
      %vm144 = vcmask 261120
      %v146 = vsel %vm144, %v139, 0
      %148 = vmatprep.subr.mxu0 0.0
      %149 = vmatpush1.msra.mxu0 %v140
      %150 = vmatprep.subr.mxu0 0.0
      %151 = vmatpush1.msra.mxu0 %v141
      %152 = vmatprep.subr.mxu0 0.0
      %153 = vmatpush1.msra.mxu0 %v142
      %154 = vmatprep.subr.mxu0 0.0
      %155 = vmatpush1.msra.mxu0 %v143
      %156 = vmatprep.subr.mxu0 0.0
      %157 = vmatpush1.msra.mxu0 0.0
      %158 = vmatprep.subr.mxu0 0.0
      %159 = vmatpush1.msra.mxu0 0.0
      %160 = vmatprep.subr.mxu0 0.0
      %161 = vmatpush1.msra.mxu0 0.0
      %162 = vmatprep.subr.mxu0 0.0
      %163 = vmatpush1.msra.mxu0 0.0
      %164 = vmatprep.subr.mxu0 0.0
      %165 = vmatpush1.msra.mxu0 0.0
      %166 = vmatprep.subr.mxu0 0.0
      %167 = vmatpush1.msra.mxu0 0.0
      %168 = vmatprep.subr.mxu0 0.0
      %169 = vmatpush1.msra.mxu0 0.0
      %170 = vmatprep.subr.mxu0 0.0
      %171 = vmatpush1.msra.mxu0 0.0
      %172 = vmatprep.subr.mxu0 0.0
      %173 = vmatpush1.msra.mxu0 0.0
      %174 = vmatprep.subr.mxu0 0.0
      %175 = vmatpush1.msra.mxu0 0.0
      %176 = vmatprep.subr.mxu0 0.0
      %177 = vmatpush1.msra.mxu0 0.0
      %178 = vmatprep.subr.mxu0 0.0
      %179 = vmatpush1.msra.mxu0 0.0
      %180 = vmatprep.subr.mxu0 0.0
      %181 = vmatpush1.msra.mxu0 0.0
      %182 = vmatprep.subr.mxu0 0.0
      %183 = vmatpush1.msra.mxu0 0.0
      %184 = vmatprep.subr.mxu0 0.0
      %185 = vmatpush1.msra.mxu0 0.0
      %186 = vmatprep.subr.mxu0 0.0
      %187 = vmatpush1.msra.mxu0 0.0
      %188 = vmatprep.subr.mxu0 0.0
      %189 = vmatpush1.msra.mxu0 0.0
      %190 = vmatprep.subr.mxu0 0.0
      %191 = vmatpush1.msra.mxu0 0.0
      %192 = vmatprep.subr.mxu0 0.0
      %193 = vmatpush1.msra.mxu0 0.0
      %194 = vmatprep.subr.mxu0 0.0
      %195 = vmatpush1.msra.mxu0 0.0
      %196 = vmatprep.subr.mxu0 0.0
      %197 = vmatpush1.msra.mxu0 0.0
      %198 = vmatprep.subr.mxu0 0.0
      %199 = vmatpush1.msra.mxu0 0.0
      %200 = vmatprep.subr.mxu0 0.0
      %201 = vmatpush1.msra.mxu0 0.0
      %202 = vmatprep.subr.mxu0 0.0
      %203 = vmatpush1.msra.mxu0 0.0
      %204 = vmatprep.subr.mxu0 0.0
      %205 = vmatpush1.msra.mxu0 0.0
      %206 = vmatprep.subr.mxu0 0.0
      %207 = vmatpush1.msra.mxu0 0.0
      %208 = vmatprep.subr.mxu0 0.0
      %209 = vmatpush1.msra.mxu0 0.0
      %210 = vmatprep.subr.mxu0 0.0
      %211 = vmatpush1.msra.mxu0 0.0
      %212 = vmatprep.mubr.f32.mxu0 0.0
      %213 = vmatmul.mubr.f32.gmra.mrb[0].mxu0 %v146
      %v214 = vpop.f32.mrb[0].mxu0
      %v215 = vadd.f32 0.0, %v214
      %v216 = vpop.f32.mrb[0].mxu0
      %217 = vdwg.mxu0
      %s218 = smul.u32 %s13, 8
      %v219 = vlaneseq
      %v220 = vshrl.u32 %v219, 7
      %v221 = vstv %s218
      %v222 = vadd.s32 %v221, %v220
      %v223 = vlaneseq
      %v224 = vand.u32 %v223, 127
      %vm225 = vcmp.lt.s32.totalorder %v224, 16
      %vm226 = vcmp.lt.s32.totalorder %v222, 0
      %v227 = vsub.s32 0, %v222
      %v228 = vsel %vm226, %v227, %v222
      %v229 = vshrl.u32 %v228, 3
      %v230 = vand.u32 %v228, 7
      %v231 = vsub.s32 0, %v230
      %v232 = vsel %vm226, %v231, %v230
      %vm233 = vcmp.ne.s32.totalorder %v232, 0
      %vm234 = vcmp.lt.s32.totalorder %v232, 0
      %vm235 = vmand %vm234, %vm233
      %v236 = vadd.s32 %v232, 8
      %v237 = vsel %vm235, %v236, %v232
      %vm238 = vcmp.lt.s32.totalorder %v224, 0
      %v239 = vsub.s32 0, %v224
      %v240 = vsel %vm238, %v239, %v224
      %v241 = vshrl.u32 %v240, 3
      %v242 = vand.u32 %v240, 7
      %v243 = vsub.s32 0, %v242
      %v244 = vsel %vm238, %v243, %v242
      %vm245 = vcmp.ne.s32.totalorder %v244, 0
      %vm246 = vcmp.lt.s32.totalorder %v244, 0
      %vm247 = vmand %vm246, %vm245
      %v248 = vadd.s32 %v244, 8
      %v249 = vsel %vm247, %v248, %v244
      %vm250 = vcmp.eq.s32.totalorder %v237, %v249
      %vm251 = vcmp.eq.s32.totalorder %v222, %v224
      %vm252 = vmxor %vm250, 1
      %v253 = vsel %vm225, 1, 0
      %vm254 = vcmp.eq.s32.totalorder %v253, 1
      %vm255 = vmand %vm254, %vm252
      %vm256 = vmand %vm254, %vm250
      %vm257 = vmxor %vm251, 1
      %vm258 = vmand %vm256, %vm257
      %v259 = vmul.f32 %v215, 1.442695
      %v260 = vpow.pop %v259
      %v261 = vsel %vm255, %v260, 0.0
      %vm262 = vcmask 130048
      %v263 = vsel %vm262, %v261, 0.0
      %264 = vadd.xlane.f32.xlu0 %v263
      %v265 = vpop.xlane.xlu0 %264
      %v266 = vsel %vm258, %v215, 0.0
      %v267 = vsel %vm262, %v266, 0.0
      %268 = vadd.xlane.f32.xlu0 %v267
      %v269 = vpop.xlane.xlu0 %268
      %v270 = vlog2.pop %v265
      %v271 = vmul.f32 %v270, 0.6931472
      %v272 = vsub.f32 %v269, %v271
      %v273 = vsub.f32 0.0, %v272
      %vm274 = vcmask 7168
      %275 = vst.msk [vmem:[%s138] sm:$0xff] %vm274, %v273
      %p276 = scmp.lt.s32.totalorder %s13, 1
      %s277 = scalar_select %p276, %s13, 1
      %s278 = smul.addr %s277, 8
      %s279 = scalar_lea.vmem %s2, %s278
      // Predicated region
      $region29: #{tpu_custom_call.1} parent=27 // pred_check
        %p280 = pneg %p78
      $region30: #{tpu_custom_call.1} parent=27 // pred_check_branch
        %282 = sbr.rel (%p280) target = $region32
      $region31: #{tpu_custom_call.1} parent=27 // pred_region
        _
      $region32: #{tpu_custom_call.1} parent=27 // pred_fallthru
        _
    $region28: #{tpu_custom_call.1} parent=5 // pred_fallthru
      _
    %p283 = scmp.le.s32.totalorder 2, %s8
    // Predicated region
    $region33: #{tpu_custom_call.1} parent=5 // pred_check
      %p284 = pneg %p283
    $region34: #{tpu_custom_call.1} parent=5 // pred_check_branch
      %286 = sbr.rel (%p284) target = $region36
    $region35: #{tpu_custom_call.1} parent=5 // pred_region
      %s287 = ssub.s32 %s8, 2
      // Predicated region
      $region37: #{tpu_custom_call.1} parent=35 // pred_check
        %p288 = pneg %p84
      $region38: #{tpu_custom_call.1} parent=35 // pred_check_branch
        %290 = sbr.rel (%p288) target = $region40
      $region39: #{tpu_custom_call.1} parent=35 // pred_region
        %p291 = scmp.lt.s32.totalorder %s14, 1
        %s292 = scalar_select %p291, %s14, 1
        %s293 = smul.addr %s292, 8
        %s294 = scalar_lea.vmem %s2, %s293
      $region40: #{tpu_custom_call.1} parent=35 // pred_fallthru
        _
    $region36: #{tpu_custom_call.1} parent=5 // pred_fallthru
      _
  $region6: #{tpu_custom_call.1} parent=0 // loop_footer
    %s12 = sadd.s32 1, %s8
  $region7: #{tpu_custom_call.1} parent=0 // loop_footer_branch
    %7 = sbr.rel target = $region3
  $region8: #{tpu_custom_call.1} parent=0 // loop_exit
    _

</llo_original>
